<compile_context>
chip_gen: v6e
topology: v6e:2x2x1
jax: 0.10.0
libtpu: 0.0.40
codegen_flags: <defaults>
</compile_context>

<pallas_src>
import functools

import jax
import jax.numpy as jnp
from jax.experimental import pallas as pl
from jax.experimental.pallas import tpu as pltpu

LANE = 128                       # vreg lane width (last dim of every tile)
SUBLANE = 8                      # f32 sublane packing
MAX_TILE_ROWS = 4096             # 4096x128 f32 tile = 2 MiB; 2 in x 2 buf = 8 MiB
VMEM_LIMIT_BYTES = 30 * 1024 * 1024   # buffers + elementwise temps, all chips OK
MIN_ROWS_FOR_TWO_CORES = 1024    # don't split tiny inputs across TensorCores


def _cdiv(a, b):
    return -(-a // b)


def _round_up(a, b):
    return _cdiv(a, b) * b


def _num_tensorcores():
    """2 only on devices with two TensorCores (v7x-style); else 1."""
    try:
        kind = jax.devices()[0].device_kind.lower()
    except Exception:
        return 1
    if "v7" in kind or "7x" in kind:
        return 2
    return 1


def _ragan_stats_kernel(x1_ref, x2_ref, out_ref, acc_ref, *, steps, tile_rows,
                        rows_valid, needs_mask, inv_n, finalize):
    c = pl.program_id(0)
    j = pl.program_id(1)

    @pl.when(j == 0)
    def _init():
        acc_ref[...] = jnp.zeros_like(acc_ref)

    x1 = x1_ref[...].astype(jnp.float32)          # (tile_rows, LANE)
    x2 = x2_ref[...].astype(jnp.float32)

    if needs_mask:
        # Rows valid in this block; <= 0 for duplicate (clamped) blocks.
        g = c * steps + j
        valid = rows_valid - g * tile_rows
        row_ids = jax.lax.broadcasted_iota(jnp.int32, (tile_rows, LANE), 0)
        keep = row_ids < valid
        x1 = jnp.where(keep, x1, 0.0)
        x2 = jnp.where(keep, x2, 0.0)

    grp = tile_rows // SUBLANE

    def _psum(v):
        # (tile_rows, LANE) -> (8, LANE): pure VPU vreg-add tree that keeps the
        # per-step accumulator update a full aligned (8,128) tile (no concat,
        # no masked sub-tile stores in the hot loop).
        return jnp.sum(v.reshape(grp, SUBLANE, LANE), axis=0)

    acc_ref[0] += _psum(x1)
    acc_ref[1] += _psum(x2)
    acc_ref[2] += _psum(x1 * x1)
    acc_ref[3] += _psum(x2 * x2)

    @pl.when(j == steps - 1)
    def _finish():
        if finalize:
            # Cross-lane reduce + the whole RaGAN algebra in-kernel: the kernel
            # emits the final scalar loss, no follow-up XLA reduction kernel.
            s1 = jnp.sum(acc_ref[0], keepdims=True)     # (1, 1)
            s2 = jnp.sum(acc_ref[1], keepdims=True)
            q1 = jnp.sum(acc_ref[2], keepdims=True)
            q2 = jnp.sum(acc_ref[3], keepdims=True)
            m1 = s1 * inv_n
            m2 = s2 * inv_n
            c_fake = m2 + 1.0                           # fake_label = +1
            c_real = m1 - 1.0                           # real_label = -1
            loss_fake = q1 * inv_n - 2.0 * c_fake * m1 + c_fake * c_fake
            loss_real = q2 * inv_n - 2.0 * c_real * m2 + c_real * c_real
            out_ref[...] = 0.5 * (loss_fake + loss_real)
        else:
            # 2-TensorCore path: dump per-core raw partials; tiny host finish.
            out_ref[...] = acc_ref[...][None]


def _ragan_loss_pallas(x1, x2, max_tile_rows=MAX_TILE_ROWS):
    assert x1.shape == x2.shape, (x1.shape, x2.shape)
    n = int(x1.size)
    assert n > 0
    max_tile_rows = _round_up(max(int(max_tile_rows), SUBLANE), SUBLANE)

    # ---- lane-dense retiling (zero-copy bitcast-reshape when n % 128 == 0) --
    rows = _cdiv(n, LANE)
    lane_pad = rows * LANE - n
    xf1 = x1.reshape(-1)
    xf2 = x2.reshape(-1)
    if lane_pad:
        # TODO(synk): this <=127-element tail pad still materializes one copy
        # of each input; an ANY-space manual-DMA tail handler would avoid it.
        xf1 = jnp.pad(xf1, (0, lane_pad))
        xf2 = jnp.pad(xf2, (0, lane_pad))
    x1t = xf1.reshape(rows, LANE)
    x2t = xf2.reshape(rows, LANE)

    # ---- static tiling -------------------------------------------------------
    ncores = _num_tensorcores() if rows >= MIN_ROWS_FOR_TWO_CORES else 1
    rows_core = _cdiv(rows, ncores)
    steps = max(1, _cdiv(rows_core, max_tile_rows))
    tile_rows = _round_up(_cdiv(rows_core, steps), SUBLANE)   # <= max_tile_rows
    blocks_needed = _cdiv(rows, tile_rows)       # last real block may be partial
    grid_blocks = ncores * steps
    needs_mask = grid_blocks * tile_rows != rows
    last_block = blocks_needed - 1

    if grid_blocks == blocks_needed:
        def in_map(c, j):
            return (c * steps + j, 0)
    else:
        # Clamp extra trailing grid blocks onto the last real block (their
        # contribution is masked to zero in-kernel) so no DMA is fully OOB.
        def in_map(c, j):
            return (jnp.minimum(c * steps + j, last_block), 0)

    in_spec = pl.BlockSpec((tile_rows, LANE), in_map)

    finalize = ncores == 1
    if finalize:
        out_shape = jax.ShapeDtypeStruct((1, 1), jnp.float32)
        out_spec = pl.BlockSpec((1, 1), lambda c, j: (0, 0))
        out_elems = 1
    else:
        out_shape = jax.ShapeDtypeStruct((ncores, 4, SUBLANE, LANE), jnp.float32)
        out_spec = pl.BlockSpec((1, 4, SUBLANE, LANE), lambda c, j: (c, 0, 0, 0))
        out_elems = ncores * 4 * SUBLANE * LANE

    if ncores > 1:
        axis0 = getattr(pltpu, "CORE_PARALLEL", pltpu.PARALLEL)
    else:
        axis0 = pltpu.ARBITRARY

    kernel = functools.partial(
        _ragan_stats_kernel, steps=steps, tile_rows=tile_rows, rows_valid=rows,
        needs_mask=needs_mask, inv_n=1.0 / n, finalize=finalize)

    in_bytes = n * (x1.dtype.itemsize + x2.dtype.itemsize)
    out = pl.pallas_call(
        kernel,
        out_shape=out_shape,
        grid=(ncores, steps),
        in_specs=[in_spec, in_spec],
        out_specs=out_spec,
        scratch_shapes=[pltpu.VMEM((4, SUBLANE, LANE), jnp.float32)],
        compiler_params=pltpu.CompilerParams(
            dimension_semantics=(axis0, pltpu.ARBITRARY),
            vmem_limit_bytes=VMEM_LIMIT_BYTES),
        cost_estimate=pl.CostEstimate(
            flops=6 * n, transcendentals=0,
            bytes_accessed=in_bytes + 4 * out_elems),
    )(x1t, x2t)

    if finalize:
        return out[0, 0]

    # 2-TensorCore path: combine the per-core partials (8 vregs) and finish.
    stats = jnp.sum(out, axis=(0, 2, 3))                  # (4,) f32
    s1, s2, q1, q2 = stats[0], stats[1], stats[2], stats[3]
    inv_n = jnp.float32(1.0 / n)
    m1 = s1 * inv_n
    m2 = s2 * inv_n
    c_fake = m2 + 1.0                                     # fake_label = +1
    c_real = m1 - 1.0                                     # real_label = -1
    loss_fake = q1 * inv_n - 2.0 * c_fake * m1 + c_fake * c_fake
    loss_real = q2 * inv_n - 2.0 * c_real * m2 + c_real * c_real
    return 0.5 * (loss_real + loss_fake)


@functools.partial(jax.jit, static_argnames=("is_generator", "max_tile_rows"))
def ragan_loss_forward(fake, real, is_generator=False,
                       max_tile_rows=MAX_TILE_ROWS):
    """Mirrors RaganLoss.forward (the `ones` buffer is implicit)."""
    if is_generator:
        return _ragan_loss_pallas(fake, real, max_tile_rows)
    return _ragan_loss_pallas(real, fake, max_tile_rows)


def _ragan_loss_ref(fake, real, is_generator=False):
    x1, x2 = (fake, real) if is_generator else (real, fake)
    x1 = x1.astype(jnp.float32)
    x2 = x2.astype(jnp.float32)
    loss_fake = jnp.mean((x1 - jnp.mean(x2) - 1.0) ** 2)
    loss_real = jnp.mean((x2 - jnp.mean(x1) + 1.0) ** 2)
    return 0.5 * (loss_real + loss_fake)


if __name__ == "__main__":
    base = jax.random.PRNGKey(0)
    # (shape, max_tile_rows): primary NCHW shape (zero-copy single-block path),
    # a forced multi-step + last-block-mask case, and a lane-tail-pad case.
    cases = [((2, 4, 16, 16), MAX_TILE_ROWS),
             ((3, 5, 16, 16), 8),
             ((2, 3, 7, 5), MAX_TILE_ROWS)]
    for idx, (shape, mtr) in enumerate(cases):
        k1, k2 = jax.random.split(jax.random.fold_in(base, idx))
        fake = jax.random.normal(k1, shape, dtype=jnp.float32)
        real = jax.random.normal(k2, shape, dtype=jnp.float32)
        for is_gen in (False, True):
            got = jax.block_until_ready(ragan_loss_forward(
                fake, real, is_generator=is_gen, max_tile_rows=mtr))
            want = _ragan_loss_ref(fake, real, is_generator=is_gen)
            assert jnp.allclose(got, want, rtol=1e-4, atol=1e-4), (
                shape, is_gen, float(got), float(want))
    print("KERNEL_OK")
</pallas_src>

<mosaic_0001>
module attributes {stable_mosaic.version = 11 : i64} {
  func.func @_ragan_stats_kernel(%arg0: i32, %arg1: i32, %arg2: memref<16x128xf32, #tpu.memory_space<vmem>>, %arg3: memref<16x128xf32, #tpu.memory_space<vmem>>, %arg4: memref<1x1xf32, #tpu.memory_space<vmem>>, %arg5: memref<4x8x128xf32, #tpu.memory_space<vmem>>) attributes {dimension_semantics = [#tpu.dimension_semantics<arbitrary>, #tpu.dimension_semantics<arbitrary>], iteration_bounds = array<i64: 1, 1>, scalar_prefetch = 0 : i64, scratch_operands = 1 : i64, tpu.core_type = #tpu.core_type<tc>, window_params = [{transform_indices = @transform_0, window_bounds = array<i64: 16, 128>}, {transform_indices = @transform_1, window_bounds = array<i64: 16, 128>}, {pipeline_mode = #tpu.pipeline_mode<synchronous>, transform_indices = @transform_2, window_bounds = array<i64: 1, 1>}]} {
    %c0_i32 = arith.constant 0 : i32
    %0 = arith.cmpi eq, %arg1, %c0_i32 : i32
    %1 = arith.extui %0 : i1 to i32
    %c0_i32_0 = arith.constant 0 : i32
    %2 = arith.cmpi ne, %1, %c0_i32_0 : i32
    scf.if %2 {
      %cst_30 = arith.constant 0.000000e+00 : f32
      %42 = vector.broadcast %cst_30 : f32 to vector<4x8x128xf32>
      %c0_31 = arith.constant 0 : index
      %c0_32 = arith.constant 0 : index
      %c0_33 = arith.constant 0 : index
      %43 = vector.load %arg5[%c0_31, %c0_32, %c0_33] : memref<4x8x128xf32, #tpu.memory_space<vmem>>, vector<4x8x128xf32>
      tpu.vector_store %arg5[%c0_31, %c0_32, %c0_33], %42 {strides = array<i32>} : memref<4x8x128xf32, #tpu.memory_space<vmem>>, vector<4x8x128xf32>,
    } else {
    }
    %c0 = arith.constant 0 : index
    %c0_1 = arith.constant 0 : index
    %3 = vector.load %arg2[%c0, %c0_1] : memref<16x128xf32, #tpu.memory_space<vmem>>, vector<16x128xf32>
    %c0_2 = arith.constant 0 : index
    %c0_3 = arith.constant 0 : index
    %4 = vector.load %arg3[%c0_2, %c0_3] : memref<16x128xf32, #tpu.memory_space<vmem>>, vector<16x128xf32>
    %c0_4 = arith.constant 0 : index
    %c0_5 = arith.constant 0 : index
    %c0_6 = arith.constant 0 : index
    %5 = vector.load %arg5[%c0_4, %c0_5, %c0_6] : memref<4x8x128xf32, #tpu.memory_space<vmem>>, vector<1x8x128xf32>
    %6 = vector.shape_cast %5 : vector<1x8x128xf32> to vector<8x128xf32>
    %7 = vector.shape_cast %3 : vector<16x128xf32> to vector<2x8x128xf32>
    %cst = arith.constant dense<0.000000e+00> : vector<8x128xf32>
    %8 = vector.multi_reduction <add>, %7, %cst [0] : vector<2x8x128xf32> to vector<8x128xf32>
    %9 = arith.addf %6, %8 : vector<8x128xf32>
    %c0_7 = arith.constant 0 : index
    %c0_8 = arith.constant 0 : index
    %c0_9 = arith.constant 0 : index
    %10 = vector.load %arg5[%c0_7, %c0_8, %c0_9] : memref<4x8x128xf32, #tpu.memory_space<vmem>>, vector<1x8x128xf32>
    %11 = vector.shape_cast %10 : vector<1x8x128xf32> to vector<8x128xf32>
    %12 = vector.shape_cast %9 : vector<8x128xf32> to vector<1x8x128xf32>
    tpu.vector_store %arg5[%c0_7, %c0_8, %c0_9], %12 {strides = array<i32>} : memref<4x8x128xf32, #tpu.memory_space<vmem>>, vector<1x8x128xf32>,
    %c1 = arith.constant 1 : index
    %c0_10 = arith.constant 0 : index
    %c0_11 = arith.constant 0 : index
    %13 = vector.load %arg5[%c1, %c0_10, %c0_11] : memref<4x8x128xf32, #tpu.memory_space<vmem>>, vector<1x8x128xf32>
    %14 = vector.shape_cast %13 : vector<1x8x128xf32> to vector<8x128xf32>
    %15 = vector.shape_cast %4 : vector<16x128xf32> to vector<2x8x128xf32>
    %cst_12 = arith.constant dense<0.000000e+00> : vector<8x128xf32>
    %16 = vector.multi_reduction <add>, %15, %cst_12 [0] : vector<2x8x128xf32> to vector<8x128xf32>
    %17 = arith.addf %14, %16 : vector<8x128xf32>
    %c1_13 = arith.constant 1 : index
    %c0_14 = arith.constant 0 : index
    %c0_15 = arith.constant 0 : index
    %18 = vector.load %arg5[%c1_13, %c0_14, %c0_15] : memref<4x8x128xf32, #tpu.memory_space<vmem>>, vector<1x8x128xf32>
    %19 = vector.shape_cast %18 : vector<1x8x128xf32> to vector<8x128xf32>
    %20 = vector.shape_cast %17 : vector<8x128xf32> to vector<1x8x128xf32>
    tpu.vector_store %arg5[%c1_13, %c0_14, %c0_15], %20 {strides = array<i32>} : memref<4x8x128xf32, #tpu.memory_space<vmem>>, vector<1x8x128xf32>,
    %c2 = arith.constant 2 : index
    %c0_16 = arith.constant 0 : index
    %c0_17 = arith.constant 0 : index
    %21 = vector.load %arg5[%c2, %c0_16, %c0_17] : memref<4x8x128xf32, #tpu.memory_space<vmem>>, vector<1x8x128xf32>
    %22 = vector.shape_cast %21 : vector<1x8x128xf32> to vector<8x128xf32>
    %23 = arith.mulf %3, %3 : vector<16x128xf32>
    %24 = vector.shape_cast %23 : vector<16x128xf32> to vector<2x8x128xf32>
    %cst_18 = arith.constant dense<0.000000e+00> : vector<8x128xf32>
    %25 = vector.multi_reduction <add>, %24, %cst_18 [0] : vector<2x8x128xf32> to vector<8x128xf32>
    %26 = arith.addf %22, %25 : vector<8x128xf32>
    %c2_19 = arith.constant 2 : index
    %c0_20 = arith.constant 0 : index
    %c0_21 = arith.constant 0 : index
    %27 = vector.load %arg5[%c2_19, %c0_20, %c0_21] : memref<4x8x128xf32, #tpu.memory_space<vmem>>, vector<1x8x128xf32>
    %28 = vector.shape_cast %27 : vector<1x8x128xf32> to vector<8x128xf32>
    %29 = vector.shape_cast %26 : vector<8x128xf32> to vector<1x8x128xf32>
    tpu.vector_store %arg5[%c2_19, %c0_20, %c0_21], %29 {strides = array<i32>} : memref<4x8x128xf32, #tpu.memory_space<vmem>>, vector<1x8x128xf32>,
    %c3 = arith.constant 3 : index
    %c0_22 = arith.constant 0 : index
    %c0_23 = arith.constant 0 : index
    %30 = vector.load %arg5[%c3, %c0_22, %c0_23] : memref<4x8x128xf32, #tpu.memory_space<vmem>>, vector<1x8x128xf32>
    %31 = vector.shape_cast %30 : vector<1x8x128xf32> to vector<8x128xf32>
    %32 = arith.mulf %4, %4 : vector<16x128xf32>
    %33 = vector.shape_cast %32 : vector<16x128xf32> to vector<2x8x128xf32>
    %cst_24 = arith.constant dense<0.000000e+00> : vector<8x128xf32>
    %34 = vector.multi_reduction <add>, %33, %cst_24 [0] : vector<2x8x128xf32> to vector<8x128xf32>
    %35 = arith.addf %31, %34 : vector<8x128xf32>
    %c3_25 = arith.constant 3 : index
    %c0_26 = arith.constant 0 : index
    %c0_27 = arith.constant 0 : index
    %36 = vector.load %arg5[%c3_25, %c0_26, %c0_27] : memref<4x8x128xf32, #tpu.memory_space<vmem>>, vector<1x8x128xf32>
    %37 = vector.shape_cast %36 : vector<1x8x128xf32> to vector<8x128xf32>
    %38 = vector.shape_cast %35 : vector<8x128xf32> to vector<1x8x128xf32>
    tpu.vector_store %arg5[%c3_25, %c0_26, %c0_27], %38 {strides = array<i32>} : memref<4x8x128xf32, #tpu.memory_space<vmem>>, vector<1x8x128xf32>,
    %c0_i32_28 = arith.constant 0 : i32
    %39 = arith.cmpi eq, %arg1, %c0_i32_28 : i32
    %40 = arith.extui %39 : i1 to i32
    %c0_i32_29 = arith.constant 0 : i32
    %41 = arith.cmpi ne, %40, %c0_i32_29 : i32
    scf.if %41 {
      %c0_30 = arith.constant 0 : index
      %c0_31 = arith.constant 0 : index
      %c0_32 = arith.constant 0 : index
      %42 = vector.load %arg5[%c0_30, %c0_31, %c0_32] : memref<4x8x128xf32, #tpu.memory_space<vmem>>, vector<1x8x128xf32>
      %43 = vector.shape_cast %42 : vector<1x8x128xf32> to vector<8x128xf32>
      %44 = vector.shape_cast %43 : vector<8x128xf32> to vector<1x8x128xf32>
      %cst_33 = arith.constant dense<0.000000e+00> : vector<1xf32>
      %45 = vector.multi_reduction <add>, %44, %cst_33 [1, 2] : vector<1x8x128xf32> to vector<1xf32>
      %46 = vector.shape_cast %45 : vector<1xf32> to vector<1x1x1xf32>
      %47 = vector.extract %46[0, 0, 0] : f32 from vector<1x1x1xf32>
      %48 = vector.broadcast %47 : f32 to vector<1x1xf32>
      %c1_34 = arith.constant 1 : index
      %c0_35 = arith.constant 0 : index
      %c0_36 = arith.constant 0 : index
      %49 = vector.load %arg5[%c1_34, %c0_35, %c0_36] : memref<4x8x128xf32, #tpu.memory_space<vmem>>, vector<1x8x128xf32>
      %50 = vector.shape_cast %49 : vector<1x8x128xf32> to vector<8x128xf32>
      %51 = vector.shape_cast %50 : vector<8x128xf32> to vector<1x8x128xf32>
      %cst_37 = arith.constant dense<0.000000e+00> : vector<1xf32>
      %52 = vector.multi_reduction <add>, %51, %cst_37 [1, 2] : vector<1x8x128xf32> to vector<1xf32>
      %53 = vector.shape_cast %52 : vector<1xf32> to vector<1x1x1xf32>
      %54 = vector.extract %53[0, 0, 0] : f32 from vector<1x1x1xf32>
      %55 = vector.broadcast %54 : f32 to vector<1x1xf32>
      %c2_38 = arith.constant 2 : index
      %c0_39 = arith.constant 0 : index
      %c0_40 = arith.constant 0 : index
      %56 = vector.load %arg5[%c2_38, %c0_39, %c0_40] : memref<4x8x128xf32, #tpu.memory_space<vmem>>, vector<1x8x128xf32>
      %57 = vector.shape_cast %56 : vector<1x8x128xf32> to vector<8x128xf32>
      %58 = vector.shape_cast %57 : vector<8x128xf32> to vector<1x8x128xf32>
      %cst_41 = arith.constant dense<0.000000e+00> : vector<1xf32>
      %59 = vector.multi_reduction <add>, %58, %cst_41 [1, 2] : vector<1x8x128xf32> to vector<1xf32>
      %60 = vector.shape_cast %59 : vector<1xf32> to vector<1x1x1xf32>
      %61 = vector.extract %60[0, 0, 0] : f32 from vector<1x1x1xf32>
      %62 = vector.broadcast %61 : f32 to vector<1x1xf32>
      %c3_42 = arith.constant 3 : index
      %c0_43 = arith.constant 0 : index
      %c0_44 = arith.constant 0 : index
      %63 = vector.load %arg5[%c3_42, %c0_43, %c0_44] : memref<4x8x128xf32, #tpu.memory_space<vmem>>, vector<1x8x128xf32>
      %64 = vector.shape_cast %63 : vector<1x8x128xf32> to vector<8x128xf32>
      %65 = vector.shape_cast %64 : vector<8x128xf32> to vector<1x8x128xf32>
      %cst_45 = arith.constant dense<0.000000e+00> : vector<1xf32>
      %66 = vector.multi_reduction <add>, %65, %cst_45 [1, 2] : vector<1x8x128xf32> to vector<1xf32>
      %67 = vector.shape_cast %66 : vector<1xf32> to vector<1x1x1xf32>
      %68 = vector.extract %67[0, 0, 0] : f32 from vector<1x1x1xf32>
      %69 = vector.broadcast %68 : f32 to vector<1x1xf32>
      %cst_46 = arith.constant 4.8828125E-4 : f32
      %70 = vector.broadcast %cst_46 : f32 to vector<1x1xf32>
      %71 = arith.mulf %48, %70 : vector<1x1xf32>
      %cst_47 = arith.constant 4.8828125E-4 : f32
      %72 = vector.broadcast %cst_47 : f32 to vector<1x1xf32>
      %73 = arith.mulf %55, %72 : vector<1x1xf32>
      %cst_48 = arith.constant 1.000000e+00 : f32
      %74 = vector.broadcast %cst_48 : f32 to vector<1x1xf32>
      %75 = arith.addf %73, %74 : vector<1x1xf32>
      %cst_49 = arith.constant 1.000000e+00 : f32
      %76 = vector.broadcast %cst_49 : f32 to vector<1x1xf32>
      %77 = arith.subf %71, %76 : vector<1x1xf32>
      %cst_50 = arith.constant 4.8828125E-4 : f32
      %78 = vector.broadcast %cst_50 : f32 to vector<1x1xf32>
      %79 = arith.mulf %62, %78 : vector<1x1xf32>
      %cst_51 = arith.constant 2.000000e+00 : f32
      %80 = vector.broadcast %cst_51 : f32 to vector<1x1xf32>
      %81 = arith.mulf %80, %75 : vector<1x1xf32>
      %82 = arith.mulf %81, %71 : vector<1x1xf32>
      %83 = arith.subf %79, %82 : vector<1x1xf32>
      %84 = arith.mulf %75, %75 : vector<1x1xf32>
      %85 = arith.addf %83, %84 : vector<1x1xf32>
      %cst_52 = arith.constant 4.8828125E-4 : f32
      %86 = vector.broadcast %cst_52 : f32 to vector<1x1xf32>
      %87 = arith.mulf %69, %86 : vector<1x1xf32>
      %cst_53 = arith.constant 2.000000e+00 : f32
      %88 = vector.broadcast %cst_53 : f32 to vector<1x1xf32>
      %89 = arith.mulf %88, %77 : vector<1x1xf32>
      %90 = arith.mulf %89, %73 : vector<1x1xf32>
      %91 = arith.subf %87, %90 : vector<1x1xf32>
      %92 = arith.mulf %77, %77 : vector<1x1xf32>
      %93 = arith.addf %91, %92 : vector<1x1xf32>
      %94 = arith.addf %85, %93 : vector<1x1xf32>
      %cst_54 = arith.constant 5.000000e-01 : f32
      %95 = vector.broadcast %cst_54 : f32 to vector<1x1xf32>
      %96 = arith.mulf %95, %94 : vector<1x1xf32>
      %c0_55 = arith.constant 0 : index
      %c0_56 = arith.constant 0 : index
      %97 = vector.load %arg4[%c0_55, %c0_56] : memref<1x1xf32, #tpu.memory_space<vmem>>, vector<1x1xf32>
      tpu.vector_store %arg4[%c0_55, %c0_56], %96 {strides = array<i32>} : memref<1x1xf32, #tpu.memory_space<vmem>>, vector<1x1xf32>,
    } else {
    }
    return
  }
  func.func @transform_0(%arg0: i32, %arg1: i32) -> (i32, i32) {
    %c1_i32 = arith.constant 1 : i32
    %0 = arith.muli %arg0, %c1_i32 : i32
    %1 = arith.addi %0, %arg1 : i32
    %c0_i32 = arith.constant 0 : i32
    %c0_i32_0 = arith.constant 0 : i32
    return %1, %c0_i32 : i32, i32
  }
  func.func @transform_1(%arg0: i32, %arg1: i32) -> (i32, i32) {
    %c1_i32 = arith.constant 1 : i32
    %0 = arith.muli %arg0, %c1_i32 : i32
    %1 = arith.addi %0, %arg1 : i32
    %c0_i32 = arith.constant 0 : i32
    %c0_i32_0 = arith.constant 0 : i32
    return %1, %c0_i32 : i32, i32
  }
  func.func @transform_2(%arg0: i32, %arg1: i32) -> (i32, i32) {
    %c0_i32 = arith.constant 0 : i32
    %c0_i32_0 = arith.constant 0 : i32
    %c0_i32_1 = arith.constant 0 : i32
    return %c0_i32, %c0_i32_0 : i32, i32
  }
}

</mosaic_0001>

<llo_original>
// kernel: ragan_loss_forward.1
$region0: #{ragan_loss_forward.1}
  #allocation0 [shape = 'u32[]', space=smem, size = 0x4, offset = 0x4, fixed_abs, tag = 'smem constant byte address 0x4 - core index']
  #allocation1 [shape = 'u32[144,128]{1,0:T(1,128)}', space=vmem, size = 0x12000, scoped, tag = 'internal scratch']
  #allocation2 [shape = 'f32[4,8,128]{2,1,0:T(8,128)}', space=vmem, size = 0x4000, scoped, tag = 'scratch operand']
  %s0 = inlined_call_operand.vmem [shape: f32[16,128], index: 0, kind: input, shape index: {}]
  %s1 = inlined_call_operand.vmem [shape: f32[16,128], index: 1, kind: input, shape index: {}]
  %s2 = inlined_call_operand.hbm [shape: f32[1,1], index: 2, kind: output, shape index: {}]
  %s3 = sld [smem:[#allocation0]]
  $region26: #{ragan_loss_forward.1} parent=0
    _
  %s5 = ssub.s32 1, %s3
  %s6 = scalar_select 0, %s5, %s3
  $region1: #{ragan_loss_forward.1} parent=0
    #allocation3 [shape = 'u8[512]{0}', space=vmem, size = 0x400, scoped, tag = 'output window, operand 0, single buffered']
    #allocation4 [shape = 's32[1]{0}', space=sflag, size = 0x4, scoped, tag = 'scoped memory for ragan_loss_forward.1']
    %7 = vsyncpa [#allocation4], 0
    // Predicated region
    $region2: #{ragan_loss_forward.1} parent=1 // pred_check
      _
    $region3: #{ragan_loss_forward.1} parent=1 // pred_check_branch
      %9 = sbr.rel (0) target = $region5
    $region4: #{ragan_loss_forward.1} parent=1 // pred_region
      %s10 = sadd.s32 0, 0
      %s11 = smul.u32 2, %s10
      %p12 = scmp.lt.s32.totalorder %s11, 1
      %s13 = scalar_select %p12, %s11, 1
      %s14 = smul.addr %s13, 8
      %s15 = scalar_lea.vmem %s0, %s14
      %s16 = sadd.s32 0, 0
      %s17 = smul.u32 2, %s16
    $region5: #{ragan_loss_forward.1} parent=1 // pred_fallthru
      _
    // Predicated region
    $region6: #{ragan_loss_forward.1} parent=1 // pred_check
      _
    $region7: #{ragan_loss_forward.1} parent=1 // pred_check_branch
      %19 = sbr.rel (0) target = $region9
    $region8: #{ragan_loss_forward.1} parent=1 // pred_region
      %s20 = sadd.s32 0, 0
      %s21 = smul.u32 2, %s20
      %p22 = scmp.lt.s32.totalorder %s21, 1
      %s23 = scalar_select %p22, %s21, 1
      %s24 = smul.addr %s23, 8
      %s25 = scalar_lea.vmem %s1, %s24
      %s26 = sadd.s32 0, 0
      %s27 = smul.u32 2, %s26
    $region9: #{ragan_loss_forward.1} parent=1 // pred_fallthru
      _
    %s28 = sadd.s32 0, 0
    %s29 = smul.u32 2, %s28
    %p30 = scmp.lt.s32.totalorder %s29, 1
    %s31 = scalar_select %p30, %s29, 1
    %s32 = smul.addr %s31, 8
    %s33 = scalar_lea.vmem %s0, %s32
    %s34 = sadd.s32 0, 0
    %s35 = smul.u32 2, %s34
    %p36 = scmp.lt.s32.totalorder %s35, 1
    %s37 = scalar_select %p36, %s35, 1
    %s38 = smul.addr %s37, 8
    %s39 = scalar_lea.vmem %s1, %s38
    %s40 = sadd.s32 0, 0
    %s41 = smul.u32 2, %s40
    %p42 = scmp.lt.s32.totalorder %s41, 1
    %s43 = scalar_select %p42, %s41, 1
    %s44 = smul.addr %s43, 8
    %s45 = scalar_lea.vmem %s0, %s44
    %s46 = sadd.s32 0, 0
    %s47 = smul.u32 2, %s46
    %s48 = sadd.s32 0, 0
    %s49 = smul.u32 2, %s48
    %p50 = scmp.lt.s32.totalorder %s49, 1
    %s51 = scalar_select %p50, %s49, 1
    %s52 = smul.addr %s51, 8
    %s53 = scalar_lea.vmem %s1, %s52
    %s54 = sadd.s32 0, 0
    %s55 = smul.u32 2, %s54
    %p56 = scmp.eq.s32.totalorder 0, 0
    // Predicated region
    $region10: #{ragan_loss_forward.1} parent=1 // pred_check
      %p57 = pneg %p56
    $region11: #{ragan_loss_forward.1} parent=1 // pred_check_branch
      %59 = sbr.rel (%p57) target = $region13
    $region12: #{ragan_loss_forward.1} parent=1 // pred_region
      %60 = vst [vmem:[#allocation2] sm:$0xff] 0.0
      %61 = vst [vmem:[#allocation2 + $0x8] sm:$0xff] 0.0
      %62 = vst [vmem:[#allocation2 + $0x10] sm:$0xff] 0.0
      %63 = vst [vmem:[#allocation2 + $0x18] sm:$0xff] 0.0
    $region13: #{ragan_loss_forward.1} parent=1 // pred_fallthru
      _
    %v64 = vld [vmem:[%s45] sm:$0xff]
    %v65 = vld [vmem:[%s45 + $0x8] sm:$0xff]
    %v66 = vld [vmem:[%s53] sm:$0xff]
    %v67 = vld [vmem:[%s53 + $0x8] sm:$0xff]
    %v68 = vld [vmem:[#allocation2] sm:$0xff]
    %v69 = vadd.f32 %v64, %v65
    %v70 = vadd.f32 %v68, %v69
    %71 = vst [vmem:[#allocation2] sm:$0xff] %v70
    %s72 = scalar_lea.vmem [#allocation2], 8
    %v73 = vld [vmem:[%s72] sm:$0xff]
    %v74 = vadd.f32 %v66, %v67
    %v75 = vadd.f32 %v73, %v74
    %76 = vst [vmem:[%s72] sm:$0xff] %v75
    %s77 = scalar_lea.vmem [#allocation2], 16
    %v78 = vld [vmem:[%s77] sm:$0xff]
    %v79 = vmul.f32 %v64, %v64
    %v80 = vmul.f32 %v65, %v65
    %v81 = vadd.f32 %v79, %v80
    %v82 = vadd.f32 %v78, %v81
    %83 = vst [vmem:[%s77] sm:$0xff] %v82
    %s84 = scalar_lea.vmem [#allocation2], 24
    %v85 = vld [vmem:[%s84] sm:$0xff]
    %v86 = vmul.f32 %v66, %v66
    %v87 = vmul.f32 %v67, %v67
    %v88 = vadd.f32 %v86, %v87
    %v89 = vadd.f32 %v85, %v88
    %90 = vst [vmem:[%s84] sm:$0xff] %v89
    // Predicated region
    $region14: #{ragan_loss_forward.1} parent=1 // pred_check
      %p91 = pneg %p56
    $region15: #{ragan_loss_forward.1} parent=1 // pred_check_branch
      %93 = sbr.rel (%p91) target = $region17
    $region16: #{ragan_loss_forward.1} parent=1 // pred_region
      %v94 = vld [vmem:[#allocation2] sm:$0xff]
      %95 = vadd.xlane.f32.xlu0 %v94
      %v96 = vpop.xlane.xlu0 %95
      %v97 = vrot.slane %v96, 4
      %v98 = vadd.f32 %v96, %v97
      %v99 = vrot.slane %v98, 2
      %v100 = vadd.f32 %v98, %v99
      %v101 = vrot.slane %v100, 1
      %v102 = vadd.f32 %v100, %v101
      %s103 = vtos %v102
      %v104 = vstv %s103
      %v105 = vld [vmem:[%s72] sm:$0xff]
      %106 = vadd.xlane.f32.xlu0 %v105
      %v107 = vpop.xlane.xlu0 %106
      %v108 = vrot.slane %v107, 4
      %v109 = vadd.f32 %v107, %v108
      %v110 = vrot.slane %v109, 2
      %v111 = vadd.f32 %v109, %v110
      %v112 = vrot.slane %v111, 1
      %v113 = vadd.f32 %v111, %v112
      %s114 = vtos %v113
      %v115 = vstv %s114
      %v116 = vld [vmem:[%s77] sm:$0xff]
      %117 = vadd.xlane.f32.xlu0 %v116
      %v118 = vpop.xlane.xlu0 %117
      %v119 = vrot.slane %v118, 4
      %v120 = vadd.f32 %v118, %v119
      %v121 = vrot.slane %v120, 2
      %v122 = vadd.f32 %v120, %v121
      %v123 = vrot.slane %v122, 1
      %v124 = vadd.f32 %v122, %v123
      %s125 = vtos %v124
      %v126 = vstv %s125
      %v127 = vld [vmem:[%s84] sm:$0xff]
      %128 = vadd.xlane.f32.xlu0 %v127
      %v129 = vpop.xlane.xlu0 %128
      %v130 = vrot.slane %v129, 4
      %v131 = vadd.f32 %v129, %v130
      %v132 = vrot.slane %v131, 2
      %v133 = vadd.f32 %v131, %v132
      %v134 = vrot.slane %v133, 1
      %v135 = vadd.f32 %v133, %v134
      %s136 = vtos %v135
      %v137 = vstv %s136
      %v138 = vmul.f32 %v104, 0.00048828125
      %v139 = vmul.f32 %v115, 0.00048828125
      %v140 = vadd.f32 %v139, 1.0
      %v141 = vsub.f32 %v138, 1.0
      %v142 = vmul.f32 %v126, 0.00048828125
      %v143 = vmul.f32 %v140, 2.0
      %v144 = vmul.f32 %v143, %v138
      %v145 = vsub.f32 %v142, %v144
      %v146 = vmul.f32 %v140, %v140
      %v147 = vadd.f32 %v145, %v146
      %v148 = vmul.f32 %v137, 0.00048828125
      %v149 = vmul.f32 %v141, 2.0
      %v150 = vmul.f32 %v149, %v139
      %v151 = vsub.f32 %v148, %v150
      %v152 = vmul.f32 %v141, %v141
      %v153 = vadd.f32 %v151, %v152
      %v154 = vadd.f32 %v147, %v153
      %v155 = vmul.f32 %v154, 0.5
      %vm156 = vcmask 0
      %157 = vst.msk [vmem:[#allocation3] sm:$0x1] %vm156, %v155
    $region17: #{ragan_loss_forward.1} parent=1 // pred_fallthru
      _
    // Predicated region
    $region18: #{ragan_loss_forward.1} parent=1 // pred_check
      _
    $region19: #{ragan_loss_forward.1} parent=1 // pred_check_branch
      %159 = sbr.rel (0) target = $region21
    $region20: #{ragan_loss_forward.1} parent=1 // pred_region
      %s161 = ssub.s32 16, 16
      %162 = vsyncadd [#allocation4], %s161
      %s164 = sshll.u32 [#allocation3], 4
      %s165 = int_to_ptr.vmem [resolvable:$true] %s164
      %167 = dma.vmem_to_hbm [thread:$0]  %s165, 16, %s2, [#allocation4]
    $region21: #{ragan_loss_forward.1} parent=1 // pred_fallthru
      _
    // Predicated region
    $region22: #{ragan_loss_forward.1} parent=1 // pred_check
      _
    $region23: #{ragan_loss_forward.1} parent=1 // pred_check_branch
      %169 = sbr.rel (0) target = $region25
    $region24: #{ragan_loss_forward.1} parent=1 // pred_region
      %170 = dma.done [#allocation4], 16
    $region25: #{ragan_loss_forward.1} parent=1 // pred_fallthru
      _
    %171 = vsyncpa [#allocation4], 1

</llo_original>
